<compile_context>
chip_gen: v7x
topology: tpu7x:2x2x1
jax: 0.10.0
libtpu: 0.0.40
codegen_flags: <defaults>
</compile_context>

<pallas_src>
import functools

import jax
import jax.numpy as jnp
from jax.experimental import pallas as pl
from jax.experimental.pallas import tpu as pltpu


def _round_up(x, m):
    return ((x + m - 1) // m) * m


# ---------------------------------------------------------------------------
# Pallas kernel: fused 3-layer tanh MLP -> two compact head matmuls
# ---------------------------------------------------------------------------
def rdnn_kernel(x_ref,
                w1_ref, b1_ref,
                w2_ref, b2_ref,
                w3_ref, b3_ref,
                ws_ref, bs_ref,
                wm_ref, bm_ref,
                logsig_ref, mu_ref,
                *, compute_dtype):
    x = x_ref[...]

    h = jnp.tanh(
        jnp.dot(x, w1_ref[...], preferred_element_type=jnp.float32) + b1_ref[...])
    h = jnp.tanh(
        jnp.dot(h.astype(compute_dtype), w2_ref[...],
                preferred_element_type=jnp.float32) + b2_ref[...])
    h = jnp.tanh(
        jnp.dot(h.astype(compute_dtype), w3_ref[...],
                preferred_element_type=jnp.float32) + b3_ref[...])

    hc = h.astype(compute_dtype)
    # sigma head is stored as the raw logit (exp applied in the wrapper on the
    # compact [B, O] slice -> keeps EUP pushes off the kernel critical path).
    logsig_ref[...] = (jnp.dot(hc, ws_ref[...],
                               preferred_element_type=jnp.float32)
                       + bs_ref[...]).astype(logsig_ref.dtype)
    mu_ref[...] = (jnp.dot(hc, wm_ref[...],
                           preferred_element_type=jnp.float32)
                   + bm_ref[...]).astype(mu_ref.dtype)


# ---------------------------------------------------------------------------
# One-time parameter packing (hoisted out of the per-call forward)
# ---------------------------------------------------------------------------
def pack_rdnn_params(params, compute_dtype=jnp.float32):
    """Torch nn.Linear stores weight as [out, in]; pre-transpose to [in, out],
    cast weights to compute_dtype, and make biases [1, out] f32 rows so the
    kernel broadcasts along lanes.  Call once; reuse across forward calls."""
    (w1, b1), (w2, b2), (w3, b3), (ws, bs), (wm, bm) = params

    def prep(w, b):
        return w.T.astype(compute_dtype), b.reshape(1, -1).astype(jnp.float32)

    packed = []
    for w, b in ((w1, b1), (w2, b2), (w3, b3), (ws, bs), (wm, bm)):
        wt, br = prep(w, b)
        packed.extend([wt, br])
    return tuple(packed)


def _pick_batch_tile(B, max_tile=4096):
    """Largest multiple-of-8 tile <= max_tile while keeping a >=2-step grid
    (v7x shards the 'parallel' batch axis across its two TensorCores)."""
    b8 = _round_up(B, 8)
    if b8 <= 8:
        return b8
    half = _round_up((b8 + 1) // 2, 8)
    return min(max_tile, half)


# ---------------------------------------------------------------------------
# Forward wrapper
# ---------------------------------------------------------------------------
def rdnn_forward(x, packed_params, *, n_outputs, n_gaussians,
                 batch_tile=None, compute_dtype=jnp.float32,
                 output_dtype=jnp.float32):
    """x: [B, inputd].  packed_params: output of pack_rdnn_params (same
    compute_dtype).  Returns (sigma [B, O], mu [B, O, G])."""
    B, inputd = x.shape
    (w1t, b1r, w2t, b2r, w3t, b3r, wst, bsr, wmt, bmr) = packed_params

    O = n_outputs
    GO = n_gaussians * n_outputs

    if batch_tile is None:
        batch_tile = _pick_batch_tile(B)
    Bp = _round_up(B, batch_tile)

    xc = x.astype(compute_dtype)
    if Bp != B:
        xc = jnp.pad(xc, ((0, Bp - B), (0, 0)))

    grid = (Bp // batch_tile,)

    # Full-array (untiled) specs for weights/biases: constant index_map, so
    # they are DMA'd once and stay resident across the grid.
    def full_spec(arr):
        return pl.BlockSpec(arr.shape, lambda i: (0, 0))

    in_specs = [
        pl.BlockSpec((batch_tile, inputd), lambda i: (i, 0)),   # x tile
        full_spec(w1t), full_spec(b1r),
        full_spec(w2t), full_spec(b2r),
        full_spec(w3t), full_spec(b3r),
        full_spec(wst), full_spec(bsr),
        full_spec(wmt), full_spec(bmr),
    ]
    out_specs = [
        pl.BlockSpec((batch_tile, O), lambda i: (i, 0)),    # log-sigma (compact)
        pl.BlockSpec((batch_tile, GO), lambda i: (i, 0)),   # mu (compact, flat)
    ]
    out_shape = (
        jax.ShapeDtypeStruct((Bp, O), output_dtype),
        jax.ShapeDtypeStruct((Bp, GO), output_dtype),
    )

    kernel = functools.partial(rdnn_kernel, compute_dtype=compute_dtype)

    log_sigma, mu_flat = pl.pallas_call(
        kernel,
        grid_spec=pltpu.PrefetchScalarGridSpec(
            num_scalar_prefetch=0,
            grid=grid,
            in_specs=in_specs,
            out_specs=out_specs,
        ),
        out_shape=out_shape,
        compiler_params=pltpu.CompilerParams(
            dimension_semantics=("parallel",),
            vmem_limit_bytes=48 * 1024 * 1024,   # < 64 MiB/TC physical on v7x
        ),
    )(xc, w1t, b1r, w2t, b2r, w3t, b3r, wst, bsr, wmt, bmr)

    if Bp != B:
        log_sigma = log_sigma[:B]
        mu_flat = mu_flat[:B]

    sigma = jnp.exp(log_sigma)
    # Same memory semantics as torch: [B, G*O].reshape(-1, O, G) (free reshape).
    mu = mu_flat.reshape(B, n_outputs, n_gaussians)
    return sigma, mu


# ---------------------------------------------------------------------------
# Deterministic parameter initialization (PyTorch nn.Linear-style uniform)
# ---------------------------------------------------------------------------
def init_rdnn_params(key, inputd, hidden_layers, n_outputs, n_gaussians):
    dims_in = [inputd] + hidden_layers[:-1]
    params = []
    layer_defs = list(zip(dims_in, hidden_layers)) + [
        (hidden_layers[-1], n_outputs),                 # sigma head
        (hidden_layers[-1], n_gaussians * n_outputs),   # mu head
    ]
    for fan_in, fan_out in layer_defs:
        key, kw, kb = jax.random.split(key, 3)
        bound = 1.0 / jnp.sqrt(fan_in)
        w = jax.random.uniform(kw, (fan_out, fan_in), jnp.float32, -bound, bound)
        b = jax.random.uniform(kb, (fan_out,), jnp.float32, -bound, bound)
        params.append((w, b))
    return params


# ---------------------------------------------------------------------------
# Pure-JAX reference for correctness checking
# ---------------------------------------------------------------------------
def rdnn_reference(x, params, n_outputs, n_gaussians):
    (w1, b1), (w2, b2), (w3, b3), (ws, bs), (wm, bm) = params
    h = jnp.tanh(x @ w1.T + b1)
    h = jnp.tanh(h @ w2.T + b2)
    h = jnp.tanh(h @ w3.T + b3)
    sigma = jnp.exp(h @ ws.T + bs)
    mu = (h @ wm.T + bm).reshape(-1, n_outputs, n_gaussians)
    return sigma, mu


if __name__ == "__main__":
    # Small shapes consistent with the module (hidden_layers, ncomp, inputd, outputd)
    inputd = 4
    hidden_layers = [32, 32, 32]
    n_gaussians = 10
    n_outputs = 3

    key = jax.random.PRNGKey(0)
    key, kx1, kx2 = jax.random.split(key, 3)
    params = init_rdnn_params(key, inputd, hidden_layers, n_outputs, n_gaussians)

    # --- f32 path, B multiple of 8 (tile=8 -> 2 parallel grid steps) ---------
    B = 16
    x = jax.random.normal(kx1, (B, inputd), jnp.float32)
    packed_f32 = pack_rdnn_params(params, compute_dtype=jnp.float32)
    sigma, mu = rdnn_forward(x, packed_f32, n_outputs=n_outputs,
                             n_gaussians=n_gaussians)
    jax.block_until_ready((sigma, mu))

    sigma_ref, mu_ref = rdnn_reference(x, params, n_outputs, n_gaussians)
    assert sigma.shape == (B, n_outputs)
    assert mu.shape == (B, n_outputs, n_gaussians)
    assert jnp.allclose(sigma, sigma_ref, rtol=1e-5, atol=1e-5)
    assert jnp.allclose(mu, mu_ref, rtol=1e-5, atol=1e-5)

    # --- remainder handling: B not a multiple of the tile --------------------
    B2 = 50
    x2 = jax.random.normal(kx2, (B2, inputd), jnp.float32)
    sigma2, mu2 = rdnn_forward(x2, packed_f32, n_outputs=n_outputs,
                               n_gaussians=n_gaussians)
    jax.block_until_ready((sigma2, mu2))
    sigma2_ref, mu2_ref = rdnn_reference(x2, params, n_outputs, n_gaussians)
    assert sigma2.shape == (B2, n_outputs)
    assert mu2.shape == (B2, n_outputs, n_gaussians)
    assert jnp.allclose(sigma2, sigma2_ref, rtol=1e-5, atol=1e-5)
    assert jnp.allclose(mu2, mu2_ref, rtol=1e-5, atol=1e-5)

    # --- bf16 matmul operands (recommended for v6e/v7x); loose tolerance -----
    packed_bf16 = pack_rdnn_params(params, compute_dtype=jnp.bfloat16)
    sigma_bf, mu_bf = rdnn_forward(x, packed_bf16, n_outputs=n_outputs,
                                   n_gaussians=n_gaussians,
                                   compute_dtype=jnp.bfloat16)
    jax.block_until_ready((sigma_bf, mu_bf))
    assert sigma_bf.shape == (B, n_outputs)
    assert mu_bf.shape == (B, n_outputs, n_gaussians)
    assert bool(jnp.all(jnp.isfinite(sigma_bf))) and bool(jnp.all(jnp.isfinite(mu_bf)))
    assert jnp.allclose(sigma_bf, sigma_ref, rtol=2e-1, atol=2e-1)
    assert jnp.allclose(mu_bf, mu_ref, rtol=2e-1, atol=2e-1)

    print("KERNEL_OK")
</pallas_src>

<mosaic_0001>
module attributes {stable_mosaic.version = 11 : i64} {
  func.func @rdnn_kernel(%arg0: i32, %arg1: memref<8x4xf32, #tpu.memory_space<vmem>>, %arg2: memref<4x32xf32, #tpu.memory_space<vmem>>, %arg3: memref<1x32xf32, #tpu.memory_space<vmem>>, %arg4: memref<32x32xf32, #tpu.memory_space<vmem>>, %arg5: memref<1x32xf32, #tpu.memory_space<vmem>>, %arg6: memref<32x32xf32, #tpu.memory_space<vmem>>, %arg7: memref<1x32xf32, #tpu.memory_space<vmem>>, %arg8: memref<32x3xf32, #tpu.memory_space<vmem>>, %arg9: memref<1x3xf32, #tpu.memory_space<vmem>>, %arg10: memref<32x30xf32, #tpu.memory_space<vmem>>, %arg11: memref<1x30xf32, #tpu.memory_space<vmem>>, %arg12: memref<8x3xf32, #tpu.memory_space<vmem>>, %arg13: memref<8x30xf32, #tpu.memory_space<vmem>>) attributes {dimension_semantics = [#tpu.dimension_semantics<parallel>], iteration_bounds = array<i64: 2>, scalar_prefetch = 0 : i64, scratch_operands = 0 : i64, tpu.core_type = #tpu.core_type<tc>, window_params = [{transform_indices = @transform_0, window_bounds = array<i64: 8, 4>}, {pipeline_mode = #tpu.pipeline_mode<synchronous>, transform_indices = @transform_1, window_bounds = array<i64: 4, 32>}, {pipeline_mode = #tpu.pipeline_mode<synchronous>, transform_indices = @transform_2, window_bounds = array<i64: 1, 32>}, {pipeline_mode = #tpu.pipeline_mode<synchronous>, transform_indices = @transform_3, window_bounds = array<i64: 32, 32>}, {pipeline_mode = #tpu.pipeline_mode<synchronous>, transform_indices = @transform_4, window_bounds = array<i64: 1, 32>}, {pipeline_mode = #tpu.pipeline_mode<synchronous>, transform_indices = @transform_5, window_bounds = array<i64: 32, 32>}, {pipeline_mode = #tpu.pipeline_mode<synchronous>, transform_indices = @transform_6, window_bounds = array<i64: 1, 32>}, {pipeline_mode = #tpu.pipeline_mode<synchronous>, transform_indices = @transform_7, window_bounds = array<i64: 32, 3>}, {pipeline_mode = #tpu.pipeline_mode<synchronous>, transform_indices = @transform_8, window_bounds = array<i64: 1, 3>}, {pipeline_mode = #tpu.pipeline_mode<synchronous>, transform_indices = @transform_9, window_bounds = array<i64: 32, 30>}, {pipeline_mode = #tpu.pipeline_mode<synchronous>, transform_indices = @transform_10, window_bounds = array<i64: 1, 30>}, {transform_indices = @transform_11, window_bounds = array<i64: 8, 3>}, {transform_indices = @transform_12, window_bounds = array<i64: 8, 30>}]} {
    %c0 = arith.constant 0 : index
    %c0_0 = arith.constant 0 : index
    %0 = vector.load %arg1[%c0, %c0_0] : memref<8x4xf32, #tpu.memory_space<vmem>>, vector<8x4xf32>
    %c0_1 = arith.constant 0 : index
    %c0_2 = arith.constant 0 : index
    %1 = vector.load %arg2[%c0_1, %c0_2] : memref<4x32xf32, #tpu.memory_space<vmem>>, vector<4x32xf32>
    %cst = arith.constant dense<0.000000e+00> : vector<8x32xf32>
    %2 = tpu.matmul %0, %1, %cst {dimension_numbers = #tpu.dot_dimension_numbers<[1], [0], [0], [1], [0, 0, 1, 1], [], []>} : vector<8x4xf32>, vector<4x32xf32>, vector<8x32xf32> -> vector<8x32xf32>
    %c0_3 = arith.constant 0 : index
    %c0_4 = arith.constant 0 : index
    %3 = vector.load %arg3[%c0_3, %c0_4] : memref<1x32xf32, #tpu.memory_space<vmem>>, vector<1x32xf32>
    %4 = vector.broadcast %3 : vector<1x32xf32> to vector<8x32xf32>
    %5 = arith.addf %2, %4 : vector<8x32xf32>
    %6 = math.tanh %5 : vector<8x32xf32>
    %c0_5 = arith.constant 0 : index
    %c0_6 = arith.constant 0 : index
    %7 = vector.load %arg4[%c0_5, %c0_6] : memref<32x32xf32, #tpu.memory_space<vmem>>, vector<32x32xf32>
    %cst_7 = arith.constant dense<0.000000e+00> : vector<8x32xf32>
    %8 = tpu.matmul %6, %7, %cst_7 {dimension_numbers = #tpu.dot_dimension_numbers<[1], [0], [0], [1], [0, 0, 1, 1], [], []>} : vector<8x32xf32>, vector<32x32xf32>, vector<8x32xf32> -> vector<8x32xf32>
    %c0_8 = arith.constant 0 : index
    %c0_9 = arith.constant 0 : index
    %9 = vector.load %arg5[%c0_8, %c0_9] : memref<1x32xf32, #tpu.memory_space<vmem>>, vector<1x32xf32>
    %10 = vector.broadcast %9 : vector<1x32xf32> to vector<8x32xf32>
    %11 = arith.addf %8, %10 : vector<8x32xf32>
    %12 = math.tanh %11 : vector<8x32xf32>
    %c0_10 = arith.constant 0 : index
    %c0_11 = arith.constant 0 : index
    %13 = vector.load %arg6[%c0_10, %c0_11] : memref<32x32xf32, #tpu.memory_space<vmem>>, vector<32x32xf32>
    %cst_12 = arith.constant dense<0.000000e+00> : vector<8x32xf32>
    %14 = tpu.matmul %12, %13, %cst_12 {dimension_numbers = #tpu.dot_dimension_numbers<[1], [0], [0], [1], [0, 0, 1, 1], [], []>} : vector<8x32xf32>, vector<32x32xf32>, vector<8x32xf32> -> vector<8x32xf32>
    %c0_13 = arith.constant 0 : index
    %c0_14 = arith.constant 0 : index
    %15 = vector.load %arg7[%c0_13, %c0_14] : memref<1x32xf32, #tpu.memory_space<vmem>>, vector<1x32xf32>
    %16 = vector.broadcast %15 : vector<1x32xf32> to vector<8x32xf32>
    %17 = arith.addf %14, %16 : vector<8x32xf32>
    %18 = math.tanh %17 : vector<8x32xf32>
    %c0_15 = arith.constant 0 : index
    %c0_16 = arith.constant 0 : index
    %19 = vector.load %arg8[%c0_15, %c0_16] : memref<32x3xf32, #tpu.memory_space<vmem>>, vector<32x3xf32>
    %cst_17 = arith.constant dense<0.000000e+00> : vector<8x3xf32>
    %20 = tpu.matmul %18, %19, %cst_17 {dimension_numbers = #tpu.dot_dimension_numbers<[1], [0], [0], [1], [0, 0, 1, 1], [], []>} : vector<8x32xf32>, vector<32x3xf32>, vector<8x3xf32> -> vector<8x3xf32>
    %c0_18 = arith.constant 0 : index
    %c0_19 = arith.constant 0 : index
    %21 = vector.load %arg9[%c0_18, %c0_19] : memref<1x3xf32, #tpu.memory_space<vmem>>, vector<1x3xf32>
    %22 = vector.broadcast %21 : vector<1x3xf32> to vector<8x3xf32>
    %23 = arith.addf %20, %22 : vector<8x3xf32>
    %c0_20 = arith.constant 0 : index
    %c0_21 = arith.constant 0 : index
    %24 = vector.load %arg12[%c0_20, %c0_21] : memref<8x3xf32, #tpu.memory_space<vmem>>, vector<8x3xf32>
    tpu.vector_store %arg12[%c0_20, %c0_21], %23 {strides = array<i32>} : memref<8x3xf32, #tpu.memory_space<vmem>>, vector<8x3xf32>,
    %c0_22 = arith.constant 0 : index
    %c0_23 = arith.constant 0 : index
    %25 = vector.load %arg10[%c0_22, %c0_23] : memref<32x30xf32, #tpu.memory_space<vmem>>, vector<32x30xf32>
    %cst_24 = arith.constant dense<0.000000e+00> : vector<8x30xf32>
    %26 = tpu.matmul %18, %25, %cst_24 {dimension_numbers = #tpu.dot_dimension_numbers<[1], [0], [0], [1], [0, 0, 1, 1], [], []>} : vector<8x32xf32>, vector<32x30xf32>, vector<8x30xf32> -> vector<8x30xf32>
    %c0_25 = arith.constant 0 : index
    %c0_26 = arith.constant 0 : index
    %27 = vector.load %arg11[%c0_25, %c0_26] : memref<1x30xf32, #tpu.memory_space<vmem>>, vector<1x30xf32>
    %28 = vector.broadcast %27 : vector<1x30xf32> to vector<8x30xf32>
    %29 = arith.addf %26, %28 : vector<8x30xf32>
    %c0_27 = arith.constant 0 : index
    %c0_28 = arith.constant 0 : index
    %30 = vector.load %arg13[%c0_27, %c0_28] : memref<8x30xf32, #tpu.memory_space<vmem>>, vector<8x30xf32>
    tpu.vector_store %arg13[%c0_27, %c0_28], %29 {strides = array<i32>} : memref<8x30xf32, #tpu.memory_space<vmem>>, vector<8x30xf32>,
    return
  }
  func.func @transform_0(%arg0: i32) -> (i32, i32) {
    %c0_i32 = arith.constant 0 : i32
    %c0_i32_0 = arith.constant 0 : i32
    return %arg0, %c0_i32 : i32, i32
  }
  func.func @transform_1(%arg0: i32) -> (i32, i32) {
    %c0_i32 = arith.constant 0 : i32
    %c0_i32_0 = arith.constant 0 : i32
    %c0_i32_1 = arith.constant 0 : i32
    return %c0_i32, %c0_i32_0 : i32, i32
  }
  func.func @transform_2(%arg0: i32) -> (i32, i32) {
    %c0_i32 = arith.constant 0 : i32
    %c0_i32_0 = arith.constant 0 : i32
    %c0_i32_1 = arith.constant 0 : i32
    return %c0_i32, %c0_i32_0 : i32, i32
  }
  func.func @transform_3(%arg0: i32) -> (i32, i32) {
    %c0_i32 = arith.constant 0 : i32
    %c0_i32_0 = arith.constant 0 : i32
    %c0_i32_1 = arith.constant 0 : i32
    return %c0_i32, %c0_i32_0 : i32, i32
  }
  func.func @transform_4(%arg0: i32) -> (i32, i32) {
    %c0_i32 = arith.constant 0 : i32
    %c0_i32_0 = arith.constant 0 : i32
    %c0_i32_1 = arith.constant 0 : i32
    return %c0_i32, %c0_i32_0 : i32, i32
  }
  func.func @transform_5(%arg0: i32) -> (i32, i32) {
    %c0_i32 = arith.constant 0 : i32
    %c0_i32_0 = arith.constant 0 : i32
    %c0_i32_1 = arith.constant 0 : i32
    return %c0_i32, %c0_i32_0 : i32, i32
  }
  func.func @transform_6(%arg0: i32) -> (i32, i32) {
    %c0_i32 = arith.constant 0 : i32
    %c0_i32_0 = arith.constant 0 : i32
    %c0_i32_1 = arith.constant 0 : i32
    return %c0_i32, %c0_i32_0 : i32, i32
  }
  func.func @transform_7(%arg0: i32) -> (i32, i32) {
    %c0_i32 = arith.constant 0 : i32
    %c0_i32_0 = arith.constant 0 : i32
    %c0_i32_1 = arith.constant 0 : i32
    return %c0_i32, %c0_i32_0 : i32, i32
  }
  func.func @transform_8(%arg0: i32) -> (i32, i32) {
    %c0_i32 = arith.constant 0 : i32
    %c0_i32_0 = arith.constant 0 : i32
    %c0_i32_1 = arith.constant 0 : i32
    return %c0_i32, %c0_i32_0 : i32, i32
  }
  func.func @transform_9(%arg0: i32) -> (i32, i32) {
    %c0_i32 = arith.constant 0 : i32
    %c0_i32_0 = arith.constant 0 : i32
    %c0_i32_1 = arith.constant 0 : i32
    return %c0_i32, %c0_i32_0 : i32, i32
  }
  func.func @transform_10(%arg0: i32) -> (i32, i32) {
    %c0_i32 = arith.constant 0 : i32
    %c0_i32_0 = arith.constant 0 : i32
    %c0_i32_1 = arith.constant 0 : i32
    return %c0_i32, %c0_i32_0 : i32, i32
  }
  func.func @transform_11(%arg0: i32) -> (i32, i32) {
    %c0_i32 = arith.constant 0 : i32
    %c0_i32_0 = arith.constant 0 : i32
    return %arg0, %c0_i32 : i32, i32
  }
  func.func @transform_12(%arg0: i32) -> (i32, i32) {
    %c0_i32 = arith.constant 0 : i32
    %c0_i32_0 = arith.constant 0 : i32
    return %arg0, %c0_i32 : i32, i32
  }
}

</mosaic_0001>

<llo_original>
// kernel: tpu_custom_call.1
$region0: #{tpu_custom_call.1}
  #allocation0 [shape = 'u32[]', space=smem, size = 0x4, offset = 0x4, fixed_abs, tag = 'smem constant byte address 0x4 - core index']
  #allocation1 [shape = 'u32[144,128]{1,0:T(1,128)}', space=vmem, size = 0x12000, scoped, tag = 'internal scratch']
  %s0 = inlined_call_operand.vmem [shape: f32[16,4], index: 0, kind: input, shape index: {}]
  %s1 = inlined_call_operand.hbm [shape: f32[4,32], index: 1, kind: input, shape index: {}]
  %s2 = inlined_call_operand.vmem [shape: f32[1,32], index: 2, kind: input, shape index: {}]
  %s3 = inlined_call_operand.vmem [shape: f32[32,32], index: 3, kind: input, shape index: {}]
  %s4 = inlined_call_operand.vmem [shape: f32[1,32], index: 4, kind: input, shape index: {}]
  %s5 = inlined_call_operand.vmem [shape: f32[32,32], index: 5, kind: input, shape index: {}]
  %s6 = inlined_call_operand.vmem [shape: f32[1,32], index: 6, kind: input, shape index: {}]
  %s7 = inlined_call_operand.vmem [shape: f32[32,3], index: 7, kind: input, shape index: {}]
  %s8 = inlined_call_operand.vmem [shape: f32[1,3], index: 8, kind: input, shape index: {}]
  %s9 = inlined_call_operand.hbm [shape: f32[32,30], index: 9, kind: input, shape index: {}]
  %s10 = inlined_call_operand.vmem [shape: f32[1,30], index: 10, kind: input, shape index: {}]
  %s11 = inlined_call_operand.vmem [shape: f32[16,3], index: 11, kind: output, shape index: {0}]
  %s12 = inlined_call_operand.hbm [shape: f32[16,30], index: 12, kind: output, shape index: {1}]
  %13 = xla_tuple %s11, %s12
  %s14 = sld [smem:[#allocation0]]
  $region93: #{tpu_custom_call.1} parent=0
    _
  %s16 = ssub.s32 1, %s14
  %s17 = scalar_select 0, %s16, %s14
  $region1: #{tpu_custom_call.1} parent=0
    #allocation2 [shape = 'u8[2048]{0}', space=vmem, size = 0x800, scoped, tag = 'input window, operand 1, single buffered']
    #allocation3 [shape = 's32[2]{0}', space=sflag, size = 0x8, scoped, tag = 'scoped memory for tpu_custom_call.1']
    #allocation4 [shape = 's32[2]{0}', space=sflag, size = 0x8, scoped, tag = 'scoped memory for tpu_custom_call.1']
    #allocation5 [shape = 'u8[16384]{0}', space=vmem, size = 0x4000, scoped, tag = 'input window, operand 9, single buffered']
    #allocation6 [shape = 's32[1]{0}', space=sflag, size = 0x4, scoped, tag = 'scoped memory for tpu_custom_call.1']
    #allocation7 [shape = 'u8[8192]{0}', space=vmem, size = 0x2000, scoped, tag = 'output window, operand 1']
    %18 = vsyncpa [#allocation3], 0
    %19 = vsyncpa [#allocation6], 0
    %20 = vsyncpa [#allocation4], 0
    %s21 = scalar_lea.sflag [#allocation4], 1
    %22 = vsyncpa %s21, 0
    loop: start=0, step=1, limit=4
    $region2: #{tpu_custom_call.1} parent=1 // loop_pre_header
      _
    $region3: #{tpu_custom_call.1} parent=1 // loop_header
      %s24 = sphi 0, %s28
      %p25 = scmp.ge.s32.totalorder %s24, 4
      %s34 = sphi 0, %s36
      %s37 = sphi 0, %s34
      %s38 = sphi 0, %s37
      %s54 = sphi 0, %s38
      %s58 = sphi 0, %s58
      %s60 = sphi 0, %s58
      %s61 = sphi 0, %s60
      %s75 = sphi 0, %s61
      %s79 = sphi 0, %s79
      %s81 = sphi 0, %s79
      %s82 = sphi 0, %s81
      %s96 = sphi 0, %s82
      %s100 = sphi 0, %s100
      %s102 = sphi 0, %s100
      %s103 = sphi 0, %s102
      %s117 = sphi 0, %s103
      %s121 = sphi 0, %s121
      %s123 = sphi 0, %s121
      %s124 = sphi 0, %s123
      %s138 = sphi 0, %s124
      %s142 = sphi 0, %s142
      %s144 = sphi 0, %s142
      %s145 = sphi 0, %s144
      %s159 = sphi 0, %s145
      %s163 = sphi 0, %s163
      %s165 = sphi 0, %s163
      %s166 = sphi 0, %s165
      %s180 = sphi 0, %s166
      %s184 = sphi 0, %s184
      %s186 = sphi 0, %s184
      %s187 = sphi 0, %s186
      %s201 = sphi 0, %s187
      %s205 = sphi 0, %s205
      %s207 = sphi 0, %s205
      %s208 = sphi 0, %s207
      %s222 = sphi 0, %s208
      %s226 = sphi 0, %s226
      %s228 = sphi 0, %s226
      %s229 = sphi 0, %s228
      %s243 = sphi 0, %s229
      %s247 = sphi 0, %s247
      %s249 = sphi 0, %s247
      %s250 = sphi 0, %s249
      %s264 = sphi 0, %s250
      %s270 = sphi 0, %s272
      %s273 = sphi 0, %s270
      %s274 = sphi 0, %s273
      %s290 = sphi 0, %s274
      %s296 = sphi 0, %s298
      %s299 = sphi 0, %s296
      %s300 = sphi 0, %s299
      %s316 = sphi 0, %s300
    $region4: #{tpu_custom_call.1} parent=1 // loop_header_branch
      %27 = sbr.rel (%p25) target = $region8
    $region5: #{tpu_custom_call.1} parent=1 // loop_body
      %s29 = ssub.s32 %s24, 1
      %s30 = ssub.s32 %s24, 2
      %s31 = sadd.s32 %s24, 1
      %s32 = ssub.s32 %s24, %s31
      %p33 = scmp.eq.s32.totalorder %s32, 0
      %s35 = sadd.s32 %s34, 1
      %s36 = scalar_select %p33, %s34, %s35
      %p39 = pneg %p33
      %p40 = scmp.eq.s32.totalorder %s24, 1
      %p41 = por %p39, %p40
      %p42 = scmp.ne.s32.totalorder %s34, %s37
      %p43 = scmp.eq.s32.totalorder %s24, 0
      %p44 = por %p42, %p43
      %p45 = scmp.ne.s32.totalorder %s34, %s37
      %p46 = scmp.eq.s32.totalorder %s29, 1
      %p47 = por %p45, %p46
      %p48 = scmp.ne.s32.totalorder %s37, %s38
      %p49 = scmp.eq.s32.totalorder %s29, 0
      %p50 = por %p48, %p49
      %p51 = scmp.ne.s32.totalorder %s37, %s38
      %p52 = scmp.eq.s32.totalorder %s30, 1
      %p53 = por %p51, %p52
      %p55 = scmp.ne.s32.totalorder %s38, %s54
      %p56 = scmp.eq.s32.totalorder %s30, 0
      %p57 = por %p55, %p56
      %s59 = sadd.s32 %s58, 1
      %p62 = scmp.eq.s32.totalorder %s24, 1
      %p63 = scmp.ne.s32.totalorder %s58, %s60
      %p64 = scmp.eq.s32.totalorder %s24, 0
      %p65 = por %p63, %p64
      %p66 = scmp.ne.s32.totalorder %s58, %s60
      %p67 = scmp.eq.s32.totalorder %s29, 1
      %p68 = por %p66, %p67
      %p69 = scmp.ne.s32.totalorder %s60, %s61
      %p70 = scmp.eq.s32.totalorder %s29, 0
      %p71 = por %p69, %p70
      %p72 = scmp.ne.s32.totalorder %s60, %s61
      %p73 = scmp.eq.s32.totalorder %s30, 1
      %p74 = por %p72, %p73
      %p76 = scmp.ne.s32.totalorder %s61, %s75
      %p77 = scmp.eq.s32.totalorder %s30, 0
      %p78 = por %p76, %p77
      %s80 = sadd.s32 %s79, 1
      %p83 = scmp.eq.s32.totalorder %s24, 1
      %p84 = scmp.ne.s32.totalorder %s79, %s81
      %p85 = scmp.eq.s32.totalorder %s24, 0
      %p86 = por %p84, %p85
      %p87 = scmp.ne.s32.totalorder %s79, %s81
      %p88 = scmp.eq.s32.totalorder %s29, 1
      %p89 = por %p87, %p88
      %p90 = scmp.ne.s32.totalorder %s81, %s82
      %p91 = scmp.eq.s32.totalorder %s29, 0
      %p92 = por %p90, %p91
      %p93 = scmp.ne.s32.totalorder %s81, %s82
      %p94 = scmp.eq.s32.totalorder %s30, 1
      %p95 = por %p93, %p94
      %p97 = scmp.ne.s32.totalorder %s82, %s96
      %p98 = scmp.eq.s32.totalorder %s30, 0
      %p99 = por %p97, %p98
      %s101 = sadd.s32 %s100, 1
      %p104 = scmp.eq.s32.totalorder %s24, 1
      %p105 = scmp.ne.s32.totalorder %s100, %s102
      %p106 = scmp.eq.s32.totalorder %s24, 0
      %p107 = por %p105, %p106
      %p108 = scmp.ne.s32.totalorder %s100, %s102
      %p109 = scmp.eq.s32.totalorder %s29, 1
      %p110 = por %p108, %p109
      %p111 = scmp.ne.s32.totalorder %s102, %s103
      %p112 = scmp.eq.s32.totalorder %s29, 0
      %p113 = por %p111, %p112
      %p114 = scmp.ne.s32.totalorder %s102, %s103
      %p115 = scmp.eq.s32.totalorder %s30, 1
      %p116 = por %p114, %p115
      %p118 = scmp.ne.s32.totalorder %s103, %s117
      %p119 = scmp.eq.s32.totalorder %s30, 0
      %p120 = por %p118, %p119
      %s122 = sadd.s32 %s121, 1
      %p125 = scmp.eq.s32.totalorder %s24, 1
      %p126 = scmp.ne.s32.totalorder %s121, %s123
      %p127 = scmp.eq.s32.totalorder %s24, 0
      %p128 = por %p126, %p127
      %p129 = scmp.ne.s32.totalorder %s121, %s123
      %p130 = scmp.eq.s32.totalorder %s29, 1
      %p131 = por %p129, %p130
      %p132 = scmp.ne.s32.totalorder %s123, %s124
      %p133 = scmp.eq.s32.totalorder %s29, 0
      %p134 = por %p132, %p133
      %p135 = scmp.ne.s32.totalorder %s123, %s124
      %p136 = scmp.eq.s32.totalorder %s30, 1
      %p137 = por %p135, %p136
      %p139 = scmp.ne.s32.totalorder %s124, %s138
      %p140 = scmp.eq.s32.totalorder %s30, 0
      %p141 = por %p139, %p140
      %s143 = sadd.s32 %s142, 1
      %p146 = scmp.eq.s32.totalorder %s24, 1
      %p147 = scmp.ne.s32.totalorder %s142, %s144
      %p148 = scmp.eq.s32.totalorder %s24, 0
      %p149 = por %p147, %p148
      %p150 = scmp.ne.s32.totalorder %s142, %s144
      %p151 = scmp.eq.s32.totalorder %s29, 1
      %p152 = por %p150, %p151
      %p153 = scmp.ne.s32.totalorder %s144, %s145
      %p154 = scmp.eq.s32.totalorder %s29, 0
      %p155 = por %p153, %p154
      %p156 = scmp.ne.s32.totalorder %s144, %s145
      %p157 = scmp.eq.s32.totalorder %s30, 1
      %p158 = por %p156, %p157
      %p160 = scmp.ne.s32.totalorder %s145, %s159
      %p161 = scmp.eq.s32.totalorder %s30, 0
      %p162 = por %p160, %p161
      %s164 = sadd.s32 %s163, 1
      %p167 = scmp.eq.s32.totalorder %s24, 1
      %p168 = scmp.ne.s32.totalorder %s163, %s165
      %p169 = scmp.eq.s32.totalorder %s24, 0
      %p170 = por %p168, %p169
      %p171 = scmp.ne.s32.totalorder %s163, %s165
      %p172 = scmp.eq.s32.totalorder %s29, 1
      %p173 = por %p171, %p172
      %p174 = scmp.ne.s32.totalorder %s165, %s166
      %p175 = scmp.eq.s32.totalorder %s29, 0
      %p176 = por %p174, %p175
      %p177 = scmp.ne.s32.totalorder %s165, %s166
      %p178 = scmp.eq.s32.totalorder %s30, 1
      %p179 = por %p177, %p178
      %p181 = scmp.ne.s32.totalorder %s166, %s180
      %p182 = scmp.eq.s32.totalorder %s30, 0
      %p183 = por %p181, %p182
      %s185 = sadd.s32 %s184, 1
      %p188 = scmp.eq.s32.totalorder %s24, 1
      %p189 = scmp.ne.s32.totalorder %s184, %s186
      %p190 = scmp.eq.s32.totalorder %s24, 0
      %p191 = por %p189, %p190
      %p192 = scmp.ne.s32.totalorder %s184, %s186
      %p193 = scmp.eq.s32.totalorder %s29, 1
      %p194 = por %p192, %p193
      %p195 = scmp.ne.s32.totalorder %s186, %s187
      %p196 = scmp.eq.s32.totalorder %s29, 0
      %p197 = por %p195, %p196
      %p198 = scmp.ne.s32.totalorder %s186, %s187
      %p199 = scmp.eq.s32.totalorder %s30, 1
      %p200 = por %p198, %p199
      %p202 = scmp.ne.s32.totalorder %s187, %s201
      %p203 = scmp.eq.s32.totalorder %s30, 0
      %p204 = por %p202, %p203
      %s206 = sadd.s32 %s205, 1
      %p209 = scmp.eq.s32.totalorder %s24, 1
      %p210 = scmp.ne.s32.totalorder %s205, %s207
      %p211 = scmp.eq.s32.totalorder %s24, 0
      %p212 = por %p210, %p211
      %p213 = scmp.ne.s32.totalorder %s205, %s207
      %p214 = scmp.eq.s32.totalorder %s29, 1
      %p215 = por %p213, %p214
      %p216 = scmp.ne.s32.totalorder %s207, %s208
      %p217 = scmp.eq.s32.totalorder %s29, 0
      %p218 = por %p216, %p217
      %p219 = scmp.ne.s32.totalorder %s207, %s208
      %p220 = scmp.eq.s32.totalorder %s30, 1
      %p221 = por %p219, %p220
      %p223 = scmp.ne.s32.totalorder %s208, %s222
      %p224 = scmp.eq.s32.totalorder %s30, 0
      %p225 = por %p223, %p224
      %s227 = sadd.s32 %s226, 1
      %p230 = scmp.eq.s32.totalorder %s24, 1
      %p231 = scmp.ne.s32.totalorder %s226, %s228
      %p232 = scmp.eq.s32.totalorder %s24, 0
      %p233 = por %p231, %p232
      %p234 = scmp.ne.s32.totalorder %s226, %s228
      %p235 = scmp.eq.s32.totalorder %s29, 1
      %p236 = por %p234, %p235
      %p237 = scmp.ne.s32.totalorder %s228, %s229
      %p238 = scmp.eq.s32.totalorder %s29, 0
      %p239 = por %p237, %p238
      %p240 = scmp.ne.s32.totalorder %s228, %s229
      %p241 = scmp.eq.s32.totalorder %s30, 1
      %p242 = por %p240, %p241
      %p244 = scmp.ne.s32.totalorder %s229, %s243
      %p245 = scmp.eq.s32.totalorder %s30, 0
      %p246 = por %p244, %p245
      %s248 = sadd.s32 %s247, 1
      %p251 = scmp.eq.s32.totalorder %s24, 1
      %p252 = scmp.ne.s32.totalorder %s247, %s249
      %p253 = scmp.eq.s32.totalorder %s24, 0
      %p254 = por %p252, %p253
      %p255 = scmp.ne.s32.totalorder %s247, %s249
      %p256 = scmp.eq.s32.totalorder %s29, 1
      %p257 = por %p255, %p256
      %p258 = scmp.ne.s32.totalorder %s249, %s250
      %p259 = scmp.eq.s32.totalorder %s29, 0
      %p260 = por %p258, %p259
      %p261 = scmp.ne.s32.totalorder %s249, %s250
      %p262 = scmp.eq.s32.totalorder %s30, 1
      %p263 = por %p261, %p262
      %p265 = scmp.ne.s32.totalorder %s250, %s264
      %p266 = scmp.eq.s32.totalorder %s30, 0
      %p267 = por %p265, %p266
      %s268 = ssub.s32 %s24, %s31
      %p269 = scmp.eq.s32.totalorder %s268, 0
      %s271 = sadd.s32 %s270, 1
      %s272 = scalar_select %p269, %s270, %s271
      %p275 = pneg %p269
      %p276 = scmp.eq.s32.totalorder %s24, 1
      %p277 = por %p275, %p276
      %p278 = scmp.ne.s32.totalorder %s270, %s273
      %p279 = scmp.eq.s32.totalorder %s24, 0
      %p280 = por %p278, %p279
      %p281 = scmp.ne.s32.totalorder %s270, %s273
      %p282 = scmp.eq.s32.totalorder %s29, 1
      %p283 = por %p281, %p282
      %p284 = scmp.ne.s32.totalorder %s273, %s274
      %p285 = scmp.eq.s32.totalorder %s29, 0
      %p286 = por %p284, %p285
      %p287 = scmp.ne.s32.totalorder %s273, %s274
      %p288 = scmp.eq.s32.totalorder %s30, 1
      %p289 = por %p287, %p288
      %p291 = scmp.ne.s32.totalorder %s274, %s290
      %p292 = scmp.eq.s32.totalorder %s30, 0
      %p293 = por %p291, %p292
      %s294 = ssub.s32 %s24, %s31
      %p295 = scmp.eq.s32.totalorder %s294, 0
      %s297 = sadd.s32 %s296, 1
      %s298 = scalar_select %p295, %s296, %s297
      %p301 = pneg %p295
      %p302 = scmp.eq.s32.totalorder %s24, 1
      %p303 = por %p301, %p302
      %p304 = scmp.ne.s32.totalorder %s296, %s299
      %p305 = scmp.eq.s32.totalorder %s24, 0
      %p306 = por %p304, %p305
      %p307 = scmp.ne.s32.totalorder %s296, %s299
      %p308 = scmp.eq.s32.totalorder %s29, 1
      %p309 = por %p307, %p308
      %p310 = scmp.ne.s32.totalorder %s299, %s300
      %p311 = scmp.eq.s32.totalorder %s29, 0
      %p312 = por %p310, %p311
      %p313 = scmp.ne.s32.totalorder %s299, %s300
      %p314 = scmp.eq.s32.totalorder %s30, 1
      %p315 = por %p313, %p314
      %p317 = scmp.ne.s32.totalorder %s300, %s316
      %p318 = scmp.eq.s32.totalorder %s30, 0
      %p319 = por %p317, %p318
      %p320 = scmp.le.s32.totalorder 1, %s24
      %p321 = scmp.lt.s32.totalorder %s24, 3
      %p322 = pnand %p320, %p321
      %p323 = pneg %p322
      // Predicated region
      $region9: #{tpu_custom_call.1} parent=5 // pred_check
        _
      $region10: #{tpu_custom_call.1} parent=5 // pred_check_branch
        %325 = sbr.rel (%p322) target = $region12
      $region11: #{tpu_custom_call.1} parent=5 // pred_region
        %s326 = ssub.s32 %s24, 1
        // Predicated region
        $region13: #{tpu_custom_call.1} parent=11 // pred_check
          %p327 = pneg %p71
        $region14: #{tpu_custom_call.1} parent=11 // pred_check_branch
          %329 = sbr.rel (%p327) target = $region16
        $region15: #{tpu_custom_call.1} parent=11 // pred_region
          %s331 = ssub.s32 64, 64
          %332 = vsyncadd [#allocation3], %s331
          %s334 = sshll.u32 [#allocation2], 4
          %s335 = int_to_ptr.vmem [resolvable:$true] %s334
          %337 = dma.hbm_to_vmem [thread:$0]  %s1, 64, %s335, [#allocation3]
        $region16: #{tpu_custom_call.1} parent=11 // pred_fallthru
          _
        // Predicated region
        $region17: #{tpu_custom_call.1} parent=11 // pred_check
          %p338 = pneg %p92
        $region18: #{tpu_custom_call.1} parent=11 // pred_check_branch
          %340 = sbr.rel (%p338) target = $region20
        $region19: #{tpu_custom_call.1} parent=11 // pred_region
          _
        $region20: #{tpu_custom_call.1} parent=11 // pred_fallthru
          _
        // Predicated region
        $region21: #{tpu_custom_call.1} parent=11 // pred_check
          %p341 = pneg %p113
        $region22: #{tpu_custom_call.1} parent=11 // pred_check_branch
          %343 = sbr.rel (%p341) target = $region24
        $region23: #{tpu_custom_call.1} parent=11 // pred_region
          _
        $region24: #{tpu_custom_call.1} parent=11 // pred_fallthru
          _
        // Predicated region
        $region25: #{tpu_custom_call.1} parent=11 // pred_check
          %p344 = pneg %p134
        $region26: #{tpu_custom_call.1} parent=11 // pred_check_branch
          %346 = sbr.rel (%p344) target = $region28
        $region27: #{tpu_custom_call.1} parent=11 // pred_region
          _
        $region28: #{tpu_custom_call.1} parent=11 // pred_fallthru
          _
        // Predicated region
        $region29: #{tpu_custom_call.1} parent=11 // pred_check
          %p347 = pneg %p155
        $region30: #{tpu_custom_call.1} parent=11 // pred_check_branch
          %349 = sbr.rel (%p347) target = $region32
        $region31: #{tpu_custom_call.1} parent=11 // pred_region
          _
        $region32: #{tpu_custom_call.1} parent=11 // pred_fallthru
          _
        // Predicated region
        $region33: #{tpu_custom_call.1} parent=11 // pred_check
          %p350 = pneg %p176
        $region34: #{tpu_custom_call.1} parent=11 // pred_check_branch
          %352 = sbr.rel (%p350) target = $region36
        $region35: #{tpu_custom_call.1} parent=11 // pred_region
          _
        $region36: #{tpu_custom_call.1} parent=11 // pred_fallthru
          _
        // Predicated region
        $region37: #{tpu_custom_call.1} parent=11 // pred_check
          %p353 = pneg %p197
        $region38: #{tpu_custom_call.1} parent=11 // pred_check_branch
          %355 = sbr.rel (%p353) target = $region40
        $region39: #{tpu_custom_call.1} parent=11 // pred_region
          _
        $region40: #{tpu_custom_call.1} parent=11 // pred_fallthru
          _
        // Predicated region
        $region41: #{tpu_custom_call.1} parent=11 // pred_check
          %p356 = pneg %p218
        $region42: #{tpu_custom_call.1} parent=11 // pred_check_branch
          %358 = sbr.rel (%p356) target = $region44
        $region43: #{tpu_custom_call.1} parent=11 // pred_region
          _
        $region44: #{tpu_custom_call.1} parent=11 // pred_fallthru
          _
        // Predicated region
        $region45: #{tpu_custom_call.1} parent=11 // pred_check
          %p359 = pneg %p239
        $region46: #{tpu_custom_call.1} parent=11 // pred_check_branch
          %361 = sbr.rel (%p359) target = $region48
        $region47: #{tpu_custom_call.1} parent=11 // pred_region
          %s363 = ssub.s32 512, 512
          %364 = vsyncadd [#allocation6], %s363
          %s365 = sshll.u32 [#allocation5], 4
          %s366 = int_to_ptr.vmem [resolvable:$true] %s365
          %371 = dma.hbm_to_vmem [thread:$0]  %s9, 512, %s366, [#allocation6], 128, 128, 8
        $region48: #{tpu_custom_call.1} parent=11 // pred_fallthru
          _
        // Predicated region
        $region49: #{tpu_custom_call.1} parent=11 // pred_check
          %p372 = pneg %p260
        $region50: #{tpu_custom_call.1} parent=11 // pred_check_branch
          %374 = sbr.rel (%p372) target = $region52
        $region51: #{tpu_custom_call.1} parent=11 // pred_region
          _
        $region52: #{tpu_custom_call.1} parent=11 // pred_fallthru
          _
      $region12: #{tpu_custom_call.1} parent=5 // pred_fallthru
        _
      %p375 = scmp.lt.s32.totalorder %s24, 2
      // Predicated region
      $region53: #{tpu_custom_call.1} parent=5 // pred_check
        %p376 = pneg %p375
      $region54: #{tpu_custom_call.1} parent=5 // pred_check_branch
        %378 = sbr.rel (%p376) target = $region56
      $region55: #{tpu_custom_call.1} parent=5 // pred_region
        // Predicated region
        $region57: #{tpu_custom_call.1} parent=55 // pred_check
          %p379 = pneg %p44
        $region58: #{tpu_custom_call.1} parent=55 // pred_check_branch
          %381 = sbr.rel (%p379) target = $region60
        $region59: #{tpu_custom_call.1} parent=55 // pred_region
          %p382 = scmp.lt.s32.totalorder %s24, 1
          %s383 = scalar_select %p382, %s24, 1
          %s384 = smul.addr %s383, 8
          %s385 = scalar_lea.vmem %s0, %s384
        $region60: #{tpu_custom_call.1} parent=55 // pred_fallthru
          _
      $region56: #{tpu_custom_call.1} parent=5 // pred_fallthru
        _
      %p386 = scmp.le.s32.totalorder 1, %s24
      %p387 = scmp.lt.s32.totalorder %s24, 3
      %p388 = pnand %p386, %p387
      %p389 = pneg %p388
      // Predicated region
      $region61: #{tpu_custom_call.1} parent=5 // pred_check
        _
      $region62: #{tpu_custom_call.1} parent=5 // pred_check_branch
        %391 = sbr.rel (%p388) target = $region64
      $region63: #{tpu_custom_call.1} parent=5 // pred_region
        %s392 = ssub.s32 %s24, 1
        // Predicated region
        $region65: #{tpu_custom_call.1} parent=63 // pred_check
          %p393 = pneg %p71
        $region66: #{tpu_custom_call.1} parent=63 // pred_check_branch
          %395 = sbr.rel (%p393) target = $region68
        $region67: #{tpu_custom_call.1} parent=63 // pred_region
          %396 = dma.done [#allocation3], 64
        $region68: #{tpu_custom_call.1} parent=63 // pred_fallthru
          _
        // Predicated region
        $region69: #{tpu_custom_call.1} parent=63 // pred_check
          %p397 = pneg %p239
        $region70: #{tpu_custom_call.1} parent=63 // pred_check_branch
          %399 = sbr.rel (%p397) target = $region72
        $region71: #{tpu_custom_call.1} parent=63 // pred_region
          %400 = dma.done [#allocation6], 512
        $region72: #{tpu_custom_call.1} parent=63 // pred_fallthru
          _
        %p401 = scmp.lt.s32.totalorder %s29, 1
        %s402 = scalar_select %p401, %s29, 1
        %s403 = smul.addr %s402, 8
        %s404 = scalar_lea.vmem %s0, %s403
        %p405 = pneg %p50
        %p406 = pneg %p47
        %p407 = pneg %p71
        %p408 = pneg %p68
        %p409 = pneg %p92
        %p410 = pneg %p89
        %p411 = pneg %p113
        %p412 = pneg %p110
        %p413 = pneg %p134
        %p414 = pneg %p131
        %p415 = pneg %p155
        %p416 = pneg %p152
        %p417 = pneg %p176
        %p418 = pneg %p173
        %p419 = pneg %p197
        %p420 = pneg %p194
        %p421 = pneg %p218
        %p422 = pneg %p215
        %p423 = pneg %p239
        %p424 = pneg %p236
        %p425 = pneg %p260
        %p426 = pneg %p257
        %p427 = pneg %p286
        %p428 = pneg %p283
        %p429 = scmp.lt.s32.totalorder %s29, 1
        %s430 = scalar_select %p429, %s29, 1
        %s431 = smul.addr %s430, 8
        %s432 = scalar_lea.vmem %s11, %s431
        %p433 = pneg %p312
        %p434 = pneg %p309
        %s435 = sand.u32 %s299, 1
        %s436 = scalar_lea.sflag [#allocation4], %s435
        %s437 = sand.u32 %s299, 1
        %s438 = smul.addr %s437, 8
        %s439 = scalar_lea.vmem [#allocation7], %s438
        %p440 = scmp.lt.s32.totalorder %s29, 1
        %s441 = scalar_select %p440, %s29, 1
        %s442 = smul.addr %s441, 8
        %s443 = scalar_lea.vmem %s0, %s442
        %p444 = scmp.lt.s32.totalorder %s29, 1
        %s445 = scalar_select %p444, %s29, 1
        %s446 = smul.addr %s445, 8
        %s447 = scalar_lea.vmem %s11, %s446
        %v448 = vld [vmem:[%s443] sm:$0xff]
        %v449 = vld [vmem:[#allocation2] sm:$0xf]
        %v450 = vld [vmem:[%s2] sm:$0x1]
        %v452 = vlaneseq
        %v453 = vshrl.u32 %v452, 7
        %v454 = vsub.s32 0, %v453
        %v455 = vrot.slane %v450, %v454
        %vm457 = vcmask 31744
        %v459 = vsel %vm457, %v448, 0
        %vm461 = vcmask 1043456
        %v463 = vsel %vm461, %v449, 0
        %465 = vmatprep.subr.mxu0 0.0
        %466 = vmatpush1.msra.mxu0 %v463
        %467 = vmatprep.subr.mxu0 0.0
        %468 = vmatpush1.msra.mxu0 0.0
        %469 = vmatprep.subr.mxu0 0.0
        %470 = vmatpush1.msra.mxu0 0.0
        %471 = vmatprep.subr.mxu0 0.0
        %472 = vmatpush1.msra.mxu0 0.0
        %473 = vmatprep.subr.mxu0 0.0
        %474 = vmatpush1.msra.mxu0 0.0
        %475 = vmatprep.subr.mxu0 0.0
        %476 = vmatpush1.msra.mxu0 0.0
        %477 = vmatprep.subr.mxu0 0.0
        %478 = vmatpush1.msra.mxu0 0.0
        %479 = vmatprep.subr.mxu0 0.0
        %480 = vmatpush1.msra.mxu0 0.0
        %481 = vmatprep.subr.mxu0 0.0
        %482 = vmatpush1.msra.mxu0 0.0
        %483 = vmatprep.subr.mxu0 0.0
        %484 = vmatpush1.msra.mxu0 0.0
        %485 = vmatprep.subr.mxu0 0.0
        %486 = vmatpush1.msra.mxu0 0.0
        %487 = vmatprep.subr.mxu0 0.0
        %488 = vmatpush1.msra.mxu0 0.0
        %489 = vmatprep.subr.mxu0 0.0
        %490 = vmatpush1.msra.mxu0 0.0
        %491 = vmatprep.subr.mxu0 0.0
        %492 = vmatpush1.msra.mxu0 0.0
        %493 = vmatprep.subr.mxu0 0.0
        %494 = vmatpush1.msra.mxu0 0.0
        %495 = vmatprep.subr.mxu0 0.0
        %496 = vmatpush1.msra.mxu0 0.0
        %497 = vmatprep.subr.mxu0 0.0
        %498 = vmatpush1.msra.mxu0 0.0
        %499 = vmatprep.subr.mxu0 0.0
        %500 = vmatpush1.msra.mxu0 0.0
        %501 = vmatprep.subr.mxu0 0.0
        %502 = vmatpush1.msra.mxu0 0.0
        %503 = vmatprep.subr.mxu0 0.0
        %504 = vmatpush1.msra.mxu0 0.0
        %505 = vmatprep.subr.mxu0 0.0
        %506 = vmatpush1.msra.mxu0 0.0
        %507 = vmatprep.subr.mxu0 0.0
        %508 = vmatpush1.msra.mxu0 0.0
        %509 = vmatprep.subr.mxu0 0.0
        %510 = vmatpush1.msra.mxu0 0.0
        %511 = vmatprep.subr.mxu0 0.0
        %512 = vmatpush1.msra.mxu0 0.0
        %513 = vmatprep.subr.mxu0 0.0
        %514 = vmatpush1.msra.mxu0 0.0
        %515 = vmatprep.subr.mxu0 0.0
        %516 = vmatpush1.msra.mxu0 0.0
        %517 = vmatprep.subr.mxu0 0.0
        %518 = vmatpush1.msra.mxu0 0.0
        %519 = vmatprep.subr.mxu0 0.0
        %520 = vmatpush1.msra.mxu0 0.0
        %521 = vmatprep.subr.mxu0 0.0
        %522 = vmatpush1.msra.mxu0 0.0
        %523 = vmatprep.subr.mxu0 0.0
        %524 = vmatpush1.msra.mxu0 0.0
        %525 = vmatprep.subr.mxu0 0.0
        %526 = vmatpush1.msra.mxu0 0.0
        %527 = vmatprep.subr.mxu0 0.0
        %528 = vmatpush1.msra.mxu0 0.0
        %529 = vmatprep.mubr.f32.mxu0 0.0
        %530 = vmatmul.mubr.f32.gmra.mrb[0].mxu0 %v459
        %v531 = vpop.f32.mrb[0].mxu0
        %v532 = vadd.f32 %v455, %v531
        %v533 = vpop.f32.mrb[0].mxu0
        %534 = vdwg.mxu0
        %v535 = vtanh.pop %v532
        %v536 = vld [vmem:[%s3] sm:$0xff]
        %v537 = vld [vmem:[%s3 + $0x8] sm:$0xff]
        %v538 = vld [vmem:[%s3 + $0x10] sm:$0xff]
        %v539 = vld [vmem:[%s3 + $0x18] sm:$0xff]
        %v540 = vld [vmem:[%s4] sm:$0x1]
        %v542 = vlaneseq
        %v543 = vshrl.u32 %v542, 7
        %v544 = vsub.s32 0, %v543
        %v545 = vrot.slane %v540, %v544
        %vm547 = vcmask 261120
        %v549 = vsel %vm547, %v535, 0
        %551 = vmatprep.subr.mxu0 0.0
        %552 = vmatpush1.msra.mxu0 %v536
        %553 = vmatprep.subr.mxu0 0.0
        %554 = vmatpush1.msra.mxu0 %v537
        %555 = vmatprep.subr.mxu0 0.0
        %556 = vmatpush1.msra.mxu0 %v538
        %557 = vmatprep.subr.mxu0 0.0
        %558 = vmatpush1.msra.mxu0 %v539
        %559 = vmatprep.subr.mxu0 0.0
        %560 = vmatpush1.msra.mxu0 0.0
        %561 = vmatprep.subr.mxu0 0.0
        %562 = vmatpush1.msra.mxu0 0.0
        %563 = vmatprep.subr.mxu0 0.0
        %564 = vmatpush1.msra.mxu0 0.0
        %565 = vmatprep.subr.mxu0 0.0
        %566 = vmatpush1.msra.mxu0 0.0
        %567 = vmatprep.subr.mxu0 0.0
        %568 = vmatpush1.msra.mxu0 0.0
        %569 = vmatprep.subr.mxu0 0.0
        %570 = vmatpush1.msra.mxu0 0.0
        %571 = vmatprep.subr.mxu0 0.0
        %572 = vmatpush1.msra.mxu0 0.0
        %573 = vmatprep.subr.mxu0 0.0
        %574 = vmatpush1.msra.mxu0 0.0
        %575 = vmatprep.subr.mxu0 0.0
        %576 = vmatpush1.msra.mxu0 0.0
        %577 = vmatprep.subr.mxu0 0.0
        %578 = vmatpush1.msra.mxu0 0.0
        %579 = vmatprep.subr.mxu0 0.0
        %580 = vmatpush1.msra.mxu0 0.0
        %581 = vmatprep.subr.mxu0 0.0
        %582 = vmatpush1.msra.mxu0 0.0
        %583 = vmatprep.subr.mxu0 0.0
        %584 = vmatpush1.msra.mxu0 0.0
        %585 = vmatprep.subr.mxu0 0.0
        %586 = vmatpush1.msra.mxu0 0.0
        %587 = vmatprep.subr.mxu0 0.0
        %588 = vmatpush1.msra.mxu0 0.0
        %589 = vmatprep.subr.mxu0 0.0
        %590 = vmatpush1.msra.mxu0 0.0
        %591 = vmatprep.subr.mxu0 0.0
        %592 = vmatpush1.msra.mxu0 0.0
        %593 = vmatprep.subr.mxu0 0.0
        %594 = vmatpush1.msra.mxu0 0.0
        %595 = vmatprep.subr.mxu0 0.0
        %596 = vmatpush1.msra.mxu0 0.0
        %597 = vmatprep.subr.mxu0 0.0
        %598 = vmatpush1.msra.mxu0 0.0
        %599 = vmatprep.subr.mxu0 0.0
        %600 = vmatpush1.msra.mxu0 0.0
        %601 = vmatprep.subr.mxu0 0.0
        %602 = vmatpush1.msra.mxu0 0.0
        %603 = vmatprep.subr.mxu0 0.0
        %604 = vmatpush1.msra.mxu0 0.0
        %605 = vmatprep.subr.mxu0 0.0
        %606 = vmatpush1.msra.mxu0 0.0
        %607 = vmatprep.subr.mxu0 0.0
        %608 = vmatpush1.msra.mxu0 0.0
        %609 = vmatprep.subr.mxu0 0.0
        %610 = vmatpush1.msra.mxu0 0.0
        %611 = vmatprep.subr.mxu0 0.0
        %612 = vmatpush1.msra.mxu0 0.0
        %613 = vmatprep.subr.mxu0 0.0
        %614 = vmatpush1.msra.mxu0 0.0
        %615 = vmatprep.mubr.f32.mxu0 0.0
        %616 = vmatmul.mubr.f32.gmra.mrb[0].mxu0 %v549
        %v617 = vpop.f32.mrb[0].mxu0
        %v618 = vadd.f32 %v545, %v617
        %v619 = vpop.f32.mrb[0].mxu0
        %620 = vdwg.mxu0
        %v621 = vtanh.pop %v618
        %v622 = vld [vmem:[%s5] sm:$0xff]
        %v623 = vld [vmem:[%s5 + $0x8] sm:$0xff]
        %v624 = vld [vmem:[%s5 + $0x10] sm:$0xff]
        %v625 = vld [vmem:[%s5 + $0x18] sm:$0xff]
        %v626 = vld [vmem:[%s6] sm:$0x1]
        %v628 = vlaneseq
        %v629 = vshrl.u32 %v628, 7
        %v630 = vsub.s32 0, %v629
        %v631 = vrot.slane %v626, %v630
        %v634 = vsel %vm547, %v621, 0
        %636 = vmatprep.subr.mxu0 0.0
        %637 = vmatpush1.msra.mxu0 %v622
        %638 = vmatprep.subr.mxu0 0.0
        %639 = vmatpush1.msra.mxu0 %v623
        %640 = vmatprep.subr.mxu0 0.0
        %641 = vmatpush1.msra.mxu0 %v624
        %642 = vmatprep.subr.mxu0 0.0
        %643 = vmatpush1.msra.mxu0 %v625
        %644 = vmatprep.subr.mxu0 0.0
        %645 = vmatpush1.msra.mxu0 0.0
        %646 = vmatprep.subr.mxu0 0.0
        %647 = vmatpush1.msra.mxu0 0.0
        %648 = vmatprep.subr.mxu0 0.0
        %649 = vmatpush1.msra.mxu0 0.0
        %650 = vmatprep.subr.mxu0 0.0
        %651 = vmatpush1.msra.mxu0 0.0
        %652 = vmatprep.subr.mxu0 0.0
        %653 = vmatpush1.msra.mxu0 0.0
        %654 = vmatprep.subr.mxu0 0.0
        %655 = vmatpush1.msra.mxu0 0.0
        %656 = vmatprep.subr.mxu0 0.0
        %657 = vmatpush1.msra.mxu0 0.0
        %658 = vmatprep.subr.mxu0 0.0
        %659 = vmatpush1.msra.mxu0 0.0
        %660 = vmatprep.subr.mxu0 0.0
        %661 = vmatpush1.msra.mxu0 0.0
        %662 = vmatprep.subr.mxu0 0.0
        %663 = vmatpush1.msra.mxu0 0.0
        %664 = vmatprep.subr.mxu0 0.0
        %665 = vmatpush1.msra.mxu0 0.0
        %666 = vmatprep.subr.mxu0 0.0
        %667 = vmatpush1.msra.mxu0 0.0
        %668 = vmatprep.subr.mxu0 0.0
        %669 = vmatpush1.msra.mxu0 0.0
        %670 = vmatprep.subr.mxu0 0.0
        %671 = vmatpush1.msra.mxu0 0.0
        %672 = vmatprep.subr.mxu0 0.0
        %673 = vmatpush1.msra.mxu0 0.0
        %674 = vmatprep.subr.mxu0 0.0
        %675 = vmatpush1.msra.mxu0 0.0
        %676 = vmatprep.subr.mxu0 0.0
        %677 = vmatpush1.msra.mxu0 0.0
        %678 = vmatprep.subr.mxu0 0.0
        %679 = vmatpush1.msra.mxu0 0.0
        %680 = vmatprep.subr.mxu0 0.0
        %681 = vmatpush1.msra.mxu0 0.0
        %682 = vmatprep.subr.mxu0 0.0
        %683 = vmatpush1.msra.mxu0 0.0
        %684 = vmatprep.subr.mxu0 0.0
        %685 = vmatpush1.msra.mxu0 0.0
        %686 = vmatprep.subr.mxu0 0.0
        %687 = vmatpush1.msra.mxu0 0.0
        %688 = vmatprep.subr.mxu0 0.0
        %689 = vmatpush1.msra.mxu0 0.0
        %690 = vmatprep.subr.mxu0 0.0
        %691 = vmatpush1.msra.mxu0 0.0
        %692 = vmatprep.subr.mxu0 0.0
        %693 = vmatpush1.msra.mxu0 0.0
        %694 = vmatprep.subr.mxu0 0.0
        %695 = vmatpush1.msra.mxu0 0.0
        %696 = vmatprep.subr.mxu0 0.0
        %697 = vmatpush1.msra.mxu0 0.0
        %698 = vmatprep.subr.mxu0 0.0
        %699 = vmatpush1.msra.mxu0 0.0
        %700 = vmatprep.mubr.f32.mxu0 0.0
        %701 = vmatmul.mubr.f32.gmra.mrb[0].mxu0 %v634
        %v702 = vpop.f32.mrb[0].mxu0
        %v703 = vadd.f32 %v631, %v702
        %v704 = vpop.f32.mrb[0].mxu0
        %705 = vdwg.mxu0
        %v706 = vtanh.pop %v703
        %v707 = vld [vmem:[%s7] sm:$0xff]
        %v708 = vld [vmem:[%s7 + $0x8] sm:$0xff]
        %v709 = vld [vmem:[%s7 + $0x10] sm:$0xff]
        %v710 = vld [vmem:[%s7 + $0x18] sm:$0xff]
        %v711 = vld [vmem:[%s8] sm:$0x1]
        %v713 = vlaneseq
        %v714 = vshrl.u32 %v713, 7
        %v715 = vsub.s32 0, %v714
        %v716 = vrot.slane %v711, %v715
        %v719 = vsel %vm547, %v706, 0
        %721 = vmatprep.subr.mxu0 0.0
        %722 = vmatpush1.msra.mxu0 %v707
        %723 = vmatprep.subr.mxu0 0.0
        %724 = vmatpush1.msra.mxu0 %v708
        %725 = vmatprep.subr.mxu0 0.0
        %726 = vmatpush1.msra.mxu0 %v709
        %727 = vmatprep.subr.mxu0 0.0
        %728 = vmatpush1.msra.mxu0 %v710
        %729 = vmatprep.subr.mxu0 0.0
        %730 = vmatpush1.msra.mxu0 0.0
        %731 = vmatprep.subr.mxu0 0.0
        %732 = vmatpush1.msra.mxu0 0.0
        %733 = vmatprep.subr.mxu0 0.0
        %734 = vmatpush1.msra.mxu0 0.0
        %735 = vmatprep.subr.mxu0 0.0
        %736 = vmatpush1.msra.mxu0 0.0
        %737 = vmatprep.subr.mxu0 0.0
        %738 = vmatpush1.msra.mxu0 0.0
        %739 = vmatprep.subr.mxu0 0.0
        %740 = vmatpush1.msra.mxu0 0.0
        %741 = vmatprep.subr.mxu0 0.0
        %742 = vmatpush1.msra.mxu0 0.0
        %743 = vmatprep.subr.mxu0 0.0
        %744 = vmatpush1.msra.mxu0 0.0
        %745 = vmatprep.subr.mxu0 0.0
        %746 = vmatpush1.msra.mxu0 0.0
        %747 = vmatprep.subr.mxu0 0.0
        %748 = vmatpush1.msra.mxu0 0.0
        %749 = vmatprep.subr.mxu0 0.0
        %750 = vmatpush1.msra.mxu0 0.0
        %751 = vmatprep.subr.mxu0 0.0
        %752 = vmatpush1.msra.mxu0 0.0
        %753 = vmatprep.subr.mxu0 0.0
        %754 = vmatpush1.msra.mxu0 0.0
        %755 = vmatprep.subr.mxu0 0.0
        %756 = vmatpush1.msra.mxu0 0.0
        %757 = vmatprep.subr.mxu0 0.0
        %758 = vmatpush1.msra.mxu0 0.0
        %759 = vmatprep.subr.mxu0 0.0
        %760 = vmatpush1.msra.mxu0 0.0
        %761 = vmatprep.subr.mxu0 0.0
        %762 = vmatpush1.msra.mxu0 0.0
        %763 = vmatprep.subr.mxu0 0.0
        %764 = vmatpush1.msra.mxu0 0.0
        %765 = vmatprep.subr.mxu0 0.0
        %766 = vmatpush1.msra.mxu0 0.0
        %767 = vmatprep.subr.mxu0 0.0
        %768 = vmatpush1.msra.mxu0 0.0
        %769 = vmatprep.subr.mxu0 0.0
        %770 = vmatpush1.msra.mxu0 0.0
        %771 = vmatprep.subr.mxu0 0.0
        %772 = vmatpush1.msra.mxu0 0.0
        %773 = vmatprep.subr.mxu0 0.0
        %774 = vmatpush1.msra.mxu0 0.0
        %775 = vmatprep.subr.mxu0 0.0
        %776 = vmatpush1.msra.mxu0 0.0
        %777 = vmatprep.subr.mxu0 0.0
        %778 = vmatpush1.msra.mxu0 0.0
        %779 = vmatprep.subr.mxu0 0.0
        %780 = vmatpush1.msra.mxu0 0.0
        %781 = vmatprep.subr.mxu0 0.0
        %782 = vmatpush1.msra.mxu0 0.0
        %783 = vmatprep.subr.mxu0 0.0
        %784 = vmatpush1.msra.mxu0 0.0
        %785 = vmatprep.mubr.f32.mxu0 0.0
        %786 = vmatmul.mubr.f32.gmra.mrb[0].mxu0 %v719
        %v787 = vpop.f32.mrb[0].mxu0
        %v788 = vadd.f32 %v716, %v787
        %v789 = vpop.f32.mrb[0].mxu0
        %790 = vdwg.mxu0
        %vm791 = vcmask 23552
        %792 = vst.msk [vmem:[%s447] sm:$0xff] %vm791, %v788
        %v793 = vld [vmem:[#allocation5] sm:$0xff]
        %v794 = vld [vmem:[#allocation5 + $0x8] sm:$0xff]
        %v795 = vld [vmem:[#allocation5 + $0x10] sm:$0xff]
        %v796 = vld [vmem:[#allocation5 + $0x18] sm:$0xff]
        %v797 = vld [vmem:[%s10] sm:$0x1]
        %v799 = vlaneseq
        %v800 = vshrl.u32 %v799, 7
        %v801 = vsub.s32 0, %v800
        %v802 = vrot.slane %v797, %v801
        %804 = vmatprep.subr.mxu0 0.0
        %805 = vmatpush1.msra.mxu0 %v793
        %806 = vmatprep.subr.mxu0 0.0
        %807 = vmatpush1.msra.mxu0 %v794
        %808 = vmatprep.subr.mxu0 0.0
        %809 = vmatpush1.msra.mxu0 %v795
        %810 = vmatprep.subr.mxu0 0.0
        %811 = vmatpush1.msra.mxu0 %v796
        %812 = vmatprep.subr.mxu0 0.0
        %813 = vmatpush1.msra.mxu0 0.0
        %814 = vmatprep.subr.mxu0 0.0
        %815 = vmatpush1.msra.mxu0 0.0
        %816 = vmatprep.subr.mxu0 0.0
        %817 = vmatpush1.msra.mxu0 0.0
        %818 = vmatprep.subr.mxu0 0.0
        %819 = vmatpush1.msra.mxu0 0.0
        %820 = vmatprep.subr.mxu0 0.0
        %821 = vmatpush1.msra.mxu0 0.0
        %822 = vmatprep.subr.mxu0 0.0
        %823 = vmatpush1.msra.mxu0 0.0
        %824 = vmatprep.subr.mxu0 0.0
        %825 = vmatpush1.msra.mxu0 0.0
        %826 = vmatprep.subr.mxu0 0.0
        %827 = vmatpush1.msra.mxu0 0.0
        %828 = vmatprep.subr.mxu0 0.0
        %829 = vmatpush1.msra.mxu0 0.0
        %830 = vmatprep.subr.mxu0 0.0
        %831 = vmatpush1.msra.mxu0 0.0
        %832 = vmatprep.subr.mxu0 0.0
        %833 = vmatpush1.msra.mxu0 0.0
        %834 = vmatprep.subr.mxu0 0.0
        %835 = vmatpush1.msra.mxu0 0.0
        %836 = vmatprep.subr.mxu0 0.0
        %837 = vmatpush1.msra.mxu0 0.0
        %838 = vmatprep.subr.mxu0 0.0
        %839 = vmatpush1.msra.mxu0 0.0
        %840 = vmatprep.subr.mxu0 0.0
        %841 = vmatpush1.msra.mxu0 0.0
        %842 = vmatprep.subr.mxu0 0.0
        %843 = vmatpush1.msra.mxu0 0.0
        %844 = vmatprep.subr.mxu0 0.0
        %845 = vmatpush1.msra.mxu0 0.0
        %846 = vmatprep.subr.mxu0 0.0
        %847 = vmatpush1.msra.mxu0 0.0
        %848 = vmatprep.subr.mxu0 0.0
        %849 = vmatpush1.msra.mxu0 0.0
        %850 = vmatprep.subr.mxu0 0.0
        %851 = vmatpush1.msra.mxu0 0.0
        %852 = vmatprep.subr.mxu0 0.0
        %853 = vmatpush1.msra.mxu0 0.0
        %854 = vmatprep.subr.mxu0 0.0
        %855 = vmatpush1.msra.mxu0 0.0
        %856 = vmatprep.subr.mxu0 0.0
        %857 = vmatpush1.msra.mxu0 0.0
        %858 = vmatprep.subr.mxu0 0.0
        %859 = vmatpush1.msra.mxu0 0.0
        %860 = vmatprep.subr.mxu0 0.0
        %861 = vmatpush1.msra.mxu0 0.0
        %862 = vmatprep.subr.mxu0 0.0
        %863 = vmatpush1.msra.mxu0 0.0
        %864 = vmatprep.subr.mxu0 0.0
        %865 = vmatpush1.msra.mxu0 0.0
        %866 = vmatprep.subr.mxu0 0.0
        %867 = vmatpush1.msra.mxu0 0.0
        %868 = vmatprep.mubr.f32.mxu0 0.0
        %869 = vmatmul.mubr.f32.gmra.mrb[0].mxu0 %v719
        %v870 = vpop.f32.mrb[0].mxu0
        %v871 = vadd.f32 %v802, %v870
        %v872 = vpop.f32.mrb[0].mxu0
        %873 = vdwg.mxu0
        %vm874 = vcmask 244736
        %875 = vst.msk [vmem:[%s439] sm:$0xff] %vm874, %v871
        %p876 = scmp.lt.s32.totalorder %s29, 1
        %s877 = scalar_select %p876, %s29, 1
        %s878 = smul.addr %s877, 8
        %s879 = scalar_lea.vmem %s11, %s878
        %s880 = sand.u32 %s299, 1
        %s881 = scalar_lea.sflag [#allocation4], %s880
        %s882 = sand.u32 %s299, 1
        %s883 = smul.addr %s882, 8
        %s884 = scalar_lea.vmem [#allocation7], %s883
        // Predicated region
        $region73: #{tpu_custom_call.1} parent=63 // pred_check
          %p885 = pneg %p283
        $region74: #{tpu_custom_call.1} parent=63 // pred_check_branch
          %887 = sbr.rel (%p885) target = $region76
        $region75: #{tpu_custom_call.1} parent=63 // pred_region
          _
        $region76: #{tpu_custom_call.1} parent=63 // pred_fallthru
          _
        // Predicated region
        $region77: #{tpu_custom_call.1} parent=63 // pred_check
          %p888 = pneg %p309
        $region78: #{tpu_custom_call.1} parent=63 // pred_check_branch
          %890 = sbr.rel (%p888) target = $region80
        $region79: #{tpu_custom_call.1} parent=63 // pred_region
          %s892 = ssub.s32 128, 128
          %893 = vsyncadd %s881, %s892
          %s894 = smul.addr %s29, 128
          %s895 = scalar_lea.hbm %s12, %s894
          %s897 = sshll.u32 %s884, 4
          %s898 = int_to_ptr.vmem [resolvable:$true] %s897
          %900 = dma.vmem_to_hbm [thread:$0]  %s898, 128, %s895, %s881
        $region80: #{tpu_custom_call.1} parent=63 // pred_fallthru
          _
      $region64: #{tpu_custom_call.1} parent=5 // pred_fallthru
        _
      %p901 = scmp.le.s32.totalorder 2, %s24
      // Predicated region
      $region81: #{tpu_custom_call.1} parent=5 // pred_check
        %p902 = pneg %p901
      $region82: #{tpu_custom_call.1} parent=5 // pred_check_branch
        %904 = sbr.rel (%p902) target = $region84
      $region83: #{tpu_custom_call.1} parent=5 // pred_region
        %s905 = ssub.s32 %s24, 2
        // Predicated region
        $region85: #{tpu_custom_call.1} parent=83 // pred_check
          %p906 = pneg %p289
        $region86: #{tpu_custom_call.1} parent=83 // pred_check_branch
          %908 = sbr.rel (%p906) target = $region88
        $region87: #{tpu_custom_call.1} parent=83 // pred_region
          %p909 = scmp.lt.s32.totalorder %s30, 1
          %s910 = scalar_select %p909, %s30, 1
          %s911 = smul.addr %s910, 8
          %s912 = scalar_lea.vmem %s11, %s911
        $region88: #{tpu_custom_call.1} parent=83 // pred_fallthru
          _
        // Predicated region
        $region89: #{tpu_custom_call.1} parent=83 // pred_check
          %p913 = pneg %p315
        $region90: #{tpu_custom_call.1} parent=83 // pred_check_branch
          %915 = sbr.rel (%p913) target = $region92
        $region91: #{tpu_custom_call.1} parent=83 // pred_region
          %s916 = sand.u32 %s300, 1
          %s917 = scalar_lea.sflag [#allocation4], %s916
          %s918 = sand.u32 %s300, 1
          %s919 = smul.addr %s918, 8
          %s920 = scalar_lea.vmem [#allocation7], %s919
          %921 = dma.done %s917, 128
        $region92: #{tpu_custom_call.1} parent=83 // pred_fallthru
          _
      $region84: #{tpu_custom_call.1} parent=5 // pred_fallthru
        _
    $region6: #{tpu_custom_call.1} parent=1 // loop_footer
      %s28 = sadd.s32 1, %s24
    $region7: #{tpu_custom_call.1} parent=1 // loop_footer_branch
      %23 = sbr.rel target = $region3
    $region8: #{tpu_custom_call.1} parent=1 // loop_exit
      _
    %922 = vsyncpa [#allocation3], 1
    %s923 = scalar_lea.sflag [#allocation3], 1
    %924 = vsyncpa %s923, 1
    %925 = vsyncpa [#allocation6], 1
    %926 = vsyncpa [#allocation4], 1
    %s927 = scalar_lea.sflag [#allocation4], 1
    %928 = vsyncpa %s927, 1

</llo_original>
